<compile_context>
chip_gen: v7x
topology: tpu7x:2x2x1
jax: 0.10.0
libtpu: 0.0.40
codegen_flags: <defaults>
</compile_context>

<pallas_src>
import functools

import jax
import jax.numpy as jnp
from jax.experimental import pallas as pl
from jax.experimental.pallas import tpu as pltpu


def _round_up(a: int, m: int) -> int:
    return ((a + m - 1) // m) * m


def mlp_softmax2_kernel(x_ref, w1_ref, b1_ref, w2d_ref, b2d_ref, out_ref):
    # Cast the streamed f32 tile to bf16 in VMEM (VPU cast) right before the MXU;
    # avoids a wrapper-side f32->bf16 materialization of x in HBM.
    x_bf = x_ref[...].astype(jnp.bfloat16)

    # Layer 1: (TILE_B, n)bf16 @ (n, H_PAD)bf16 -> f32 accumulate (MXU).
    h = jnp.dot(x_bf, w1_ref[...], preferred_element_type=jnp.float32)
    h = jnp.maximum(h + b1_ref[...], 0.0)  # bias + ReLU in f32 (VPU)

    # Layer 2 on "difference" weights: d[:,0] = l0-l1, d[:,1] = l1-l0 where
    # l = h @ w2 + b2.  (TILE_B, H_PAD)bf16 @ (H_PAD, 2)bf16 -> f32.
    d = jnp.dot(h.astype(jnp.bfloat16), w2d_ref[...],
                preferred_element_type=jnp.float32) + b2d_ref[...]

    # 2-class softmax == element-wise stable sigmoid of the pairwise differences.
    # All VPU/EUP work, no XLU cross-lane reductions; rows sum to exactly 1.
    e = jnp.exp(-jnp.abs(d))          # EUP
    sig = 1.0 / (1.0 + e)             # sigmoid(|d|)
    probs = jnp.where(d >= 0.0, sig, 1.0 - sig)
    out_ref[...] = probs.astype(out_ref.dtype)


def pack_params(w1, b1, w2, b2):
    """One-time weight prep (call once, outside the per-forward hot path).

    Pads hidden to a lane multiple, folds the 2-class softmax into second-layer
    "difference" weights (in f32, then bf16), and casts matmul operands to bf16.
    Weights are stored (in_features, out_features); b1/b2 may be 1-D or (1, F).
    """
    n, hidden = w1.shape
    n_out = w2.shape[1]
    assert w2.shape == (hidden, n_out) and n_out == 2, "closed-form softmax needs 2 classes"

    h_pad = _round_up(hidden, 128)

    w1_p = jnp.pad(w1.astype(jnp.float32),
                   ((0, 0), (0, h_pad - hidden))).astype(jnp.bfloat16)
    b1_p = jnp.pad(b1.reshape(1, hidden).astype(jnp.float32),
                   ((0, 0), (0, h_pad - hidden)))

    # Fold the 2-class softmax into layer 2: column 0 computes l0-l1, column 1
    # computes l1-l0 (exact negation); padded hidden rows are zero.
    w2f = w2.astype(jnp.float32)
    w2d = jnp.stack([w2f[:, 0] - w2f[:, 1], w2f[:, 1] - w2f[:, 0]], axis=1)
    w2d = jnp.pad(w2d, ((0, h_pad - hidden), (0, 0))).astype(jnp.bfloat16)
    b2v = b2.reshape(-1).astype(jnp.float32)
    b2d = jnp.stack([b2v[0] - b2v[1], b2v[1] - b2v[0]]).reshape(1, 2)
    return w1_p, b1_p, w2d, b2d


def _choose_tile_b(B: int, n: int, h_pad: int) -> int:
    """Batch tile: MiB-scale x per step, >=4 steps for big B, VMEM-guarded for v7x."""

    def fits(t):
        # x double-buffered f32 + resident bf16 w1 + f32/bf16 intermediates;
        # ~44 MiB cap keeps headroom inside v7x's 64 MiB physical VMEM.
        return (2 * t * n * 4 + t * h_pad * 8 + n * h_pad * 2) <= (44 << 20)

    if B < 256 and fits(B):
        return B                                   # single grid step, block == full array
    target = max(64, (2 * 1024 * 1024) // max(n * 4, 1))   # ~2 MiB of f32 x per step
    tb = min(target, max(64, B // 4))              # >= ~4 grid steps (2 per TC on v7x)
    tb = min(tb, B)
    tb = max(8, (tb // 8) * 8)
    while tb > 8 and not fits(tb):
        tb = max(8, ((tb // 2) // 8) * 8)
    return tb


def neural_network_forward(x, w1_p, b1_p, w2d, b2d):
    """Flatten -> Linear(n,hidden) -> ReLU -> Linear(hidden,2) -> softmax(dim=1).

    Takes pre-packed params from pack_params(); x stays in its native dtype.
    """
    B = x.shape[0]
    x_flat = x.reshape(B, -1)                      # nn.Flatten (glue, stays in JAX)
    n, h_pad = w1_p.shape
    assert x_flat.shape[1] == n, (x_flat.shape, w1_p.shape)

    # ---- batch tiling ------------------------------------------------------------
    tb = _choose_tile_b(B, n, h_pad)
    b_pad = _round_up(B, tb)
    if b_pad != B:                                  # only pad x when tb doesn't divide B
        x_flat = jnp.pad(x_flat, ((0, b_pad - B), (0, 0)))
    grid = (b_pad // tb,)

    # ---- explicit VMEM budget ----------------------------------------------------
    vmem_bytes = (2 * tb * n * 4          # x tile, double-buffered f32
                  + n * h_pad * 2         # w1, single-buffered bf16
                  + h_pad * 4             # b1 (f32)
                  + h_pad * 2 * 2 + 64    # w2d (bf16) + b2d (f32)
                  + 2 * tb * 2 * 4        # out, double-buffered f32
                  + tb * h_pad * 8        # f32 + bf16 intermediates
                  + (2 << 20))            # headroom
    vmem_bytes = int(min(max(vmem_bytes, 4 << 20), 96 << 20))

    # ---- cost estimate (helps XLA schedule around the custom call) ----------------
    cost = pl.CostEstimate(
        flops=2 * b_pad * (n * h_pad + h_pad * 2),
        transcendentals=b_pad * 2,
        bytes_accessed=(b_pad * n * 4              # x (f32, streamed once)
                        + n * h_pad * 2            # w1 (bf16)
                        + h_pad * 4                # b1 (f32)
                        + h_pad * 2 * 2 + 2 * 4    # w2d (bf16) + b2d (f32)
                        + b_pad * 2 * 4),          # output (f32)
    )

    resident = pl.Buffered(1)   # constant index_map -> never re-DMA'd; 1 buffer is enough

    out = pl.pallas_call(
        mlp_softmax2_kernel,
        out_shape=jax.ShapeDtypeStruct((b_pad, 2), jnp.float32),
        grid=grid,
        in_specs=[
            pl.BlockSpec((tb, n), lambda i: (i, 0)),                               # x: streamed
            pl.BlockSpec((n, h_pad), lambda i: (0, 0), pipeline_mode=resident),    # w1: resident
            pl.BlockSpec((1, h_pad), lambda i: (0, 0), pipeline_mode=resident),    # b1: resident
            pl.BlockSpec((h_pad, 2), lambda i: (0, 0), pipeline_mode=resident),    # w2 diff
            pl.BlockSpec((1, 2), lambda i: (0, 0), pipeline_mode=resident),        # b2 diff
        ],
        out_specs=pl.BlockSpec((tb, 2), lambda i: (i, 0)),
        compiler_params=pltpu.CompilerParams(
            dimension_semantics=("parallel",),
            vmem_limit_bytes=vmem_bytes,
        ),
        cost_estimate=cost,
    )(x_flat, w1_p, b1_p, w2d, b2d)

    return out[:B]


def init_params(key, n, hidden=100, n_out=2):
    """PyTorch-style default init U(-1/sqrt(fan_in), 1/sqrt(fan_in)); weights (in,out)."""
    k1, k2, k3, k4 = jax.random.split(key, 4)
    lim1 = 1.0 / jnp.sqrt(jnp.float32(n))
    lim2 = 1.0 / jnp.sqrt(jnp.float32(hidden))
    w1 = jax.random.uniform(k1, (n, hidden), jnp.float32, -lim1, lim1)
    b1 = jax.random.uniform(k2, (hidden,), jnp.float32, -lim1, lim1)
    w2 = jax.random.uniform(k3, (hidden, n_out), jnp.float32, -lim2, lim2)
    b2 = jax.random.uniform(k4, (n_out,), jnp.float32, -lim2, lim2)
    return w1, b1, w2, b2


if __name__ == "__main__":
    key = jax.random.PRNGKey(0)
    kx, kp = jax.random.split(key)

    # Small demo shapes consistent with Flatten: (B, C, H, W) -> n = 4*4*8 = 128.
    B, C, H, W = 16, 4, 4, 8
    x = jax.random.normal(kx, (B, C, H, W), dtype=jnp.float32)

    n = C * H * W
    w1, b1, w2, b2 = init_params(kp, n, hidden=100, n_out=2)

    packed = pack_params(w1, b1, w2, b2)            # one-time weight prep (off the hot path)
    fwd = jax.jit(neural_network_forward)
    prob = jax.block_until_ready(fwd(x, *packed))

    # Pure-JAX f32 reference of the original module.
    x_flat = x.reshape(B, -1)
    logits = jnp.maximum(x_flat @ w1 + b1, 0.0) @ w2 + b2
    ref = jax.nn.softmax(logits, axis=1)

    assert prob.shape == (B, 2)
    assert jnp.allclose(jnp.sum(prob, axis=1), 1.0, atol=1e-5)
    assert jnp.allclose(prob, ref, atol=2e-2, rtol=2e-2), float(jnp.max(jnp.abs(prob - ref)))

    print("KERNEL_OK")
</pallas_src>

<mosaic_0001>
module attributes {stable_mosaic.version = 11 : i64} {
  func.func @mlp_softmax2_kernel(%arg0: i32, %arg1: memref<16x128xf32, #tpu.memory_space<vmem>>, %arg2: memref<128x128xbf16, #tpu.memory_space<vmem>>, %arg3: memref<1x128xf32, #tpu.memory_space<vmem>>, %arg4: memref<128x2xbf16, #tpu.memory_space<vmem>>, %arg5: memref<1x2xf32, #tpu.memory_space<vmem>>, %arg6: memref<16x2xf32, #tpu.memory_space<vmem>>) attributes {dimension_semantics = [#tpu.dimension_semantics<parallel>], iteration_bounds = array<i64: 1>, scalar_prefetch = 0 : i64, scratch_operands = 0 : i64, tpu.core_type = #tpu.core_type<tc>, window_params = [{transform_indices = @transform_0, window_bounds = array<i64: 16, 128>}, {pipeline_mode = #tpu.pipeline_mode<synchronous>, transform_indices = @transform_1, window_bounds = array<i64: 128, 128>}, {pipeline_mode = #tpu.pipeline_mode<synchronous>, transform_indices = @transform_2, window_bounds = array<i64: 1, 128>}, {pipeline_mode = #tpu.pipeline_mode<synchronous>, transform_indices = @transform_3, window_bounds = array<i64: 128, 2>}, {pipeline_mode = #tpu.pipeline_mode<synchronous>, transform_indices = @transform_4, window_bounds = array<i64: 1, 2>}, {transform_indices = @transform_5, window_bounds = array<i64: 16, 2>}]} {
    %c0 = arith.constant 0 : index
    %c0_0 = arith.constant 0 : index
    %0 = vector.load %arg1[%c0, %c0_0] : memref<16x128xf32, #tpu.memory_space<vmem>>, vector<16x128xf32>
    %1 = arith.truncf %0 : vector<16x128xf32> to vector<16x128xbf16>
    %c0_1 = arith.constant 0 : index
    %c0_2 = arith.constant 0 : index
    %2 = vector.load %arg2[%c0_1, %c0_2] : memref<128x128xbf16, #tpu.memory_space<vmem>>, vector<128x128xbf16>
    %cst = arith.constant dense<0.000000e+00> : vector<16x128xf32>
    %3 = tpu.matmul %1, %2, %cst {dimension_numbers = #tpu.dot_dimension_numbers<[1], [0], [0], [1], [0, 0, 1, 1], [], []>} : vector<16x128xbf16>, vector<128x128xbf16>, vector<16x128xf32> -> vector<16x128xf32>
    %c0_3 = arith.constant 0 : index
    %c0_4 = arith.constant 0 : index
    %4 = vector.load %arg3[%c0_3, %c0_4] : memref<1x128xf32, #tpu.memory_space<vmem>>, vector<1x128xf32>
    %5 = vector.broadcast %4 : vector<1x128xf32> to vector<16x128xf32>
    %6 = arith.addf %3, %5 : vector<16x128xf32>
    %cst_5 = arith.constant 0.000000e+00 : f32
    %7 = vector.broadcast %cst_5 : f32 to vector<16x128xf32>
    %8 = arith.maximumf %6, %7 : vector<16x128xf32>
    %9 = arith.truncf %8 : vector<16x128xf32> to vector<16x128xbf16>
    %c0_6 = arith.constant 0 : index
    %c0_7 = arith.constant 0 : index
    %10 = vector.load %arg4[%c0_6, %c0_7] : memref<128x2xbf16, #tpu.memory_space<vmem>>, vector<128x2xbf16>
    %cst_8 = arith.constant dense<0.000000e+00> : vector<16x2xf32>
    %11 = tpu.matmul %9, %10, %cst_8 {dimension_numbers = #tpu.dot_dimension_numbers<[1], [0], [0], [1], [0, 0, 1, 1], [], []>} : vector<16x128xbf16>, vector<128x2xbf16>, vector<16x2xf32> -> vector<16x2xf32>
    %c0_9 = arith.constant 0 : index
    %c0_10 = arith.constant 0 : index
    %12 = vector.load %arg5[%c0_9, %c0_10] : memref<1x2xf32, #tpu.memory_space<vmem>>, vector<1x2xf32>
    %13 = vector.broadcast %12 : vector<1x2xf32> to vector<16x2xf32>
    %14 = arith.addf %11, %13 : vector<16x2xf32>
    %15 = math.absf %14 : vector<16x2xf32>
    %cst_11 = arith.constant 0.000000e+00 : f32
    %16 = vector.broadcast %cst_11 : f32 to vector<16x2xf32>
    %17 = arith.subf %16, %15 : vector<16x2xf32>
    %18 = math.exp %17 : vector<16x2xf32>
    %cst_12 = arith.constant 1.000000e+00 : f32
    %19 = vector.broadcast %cst_12 : f32 to vector<16x2xf32>
    %20 = arith.addf %19, %18 : vector<16x2xf32>
    %cst_13 = arith.constant 1.000000e+00 : f32
    %21 = vector.broadcast %cst_13 : f32 to vector<16x2xf32>
    %22 = arith.divf %21, %20 : vector<16x2xf32>
    %cst_14 = arith.constant 0.000000e+00 : f32
    %23 = vector.broadcast %cst_14 : f32 to vector<16x2xf32>
    %24 = arith.cmpf oge, %14, %23 : vector<16x2xf32>
    %cst_15 = arith.constant 1.000000e+00 : f32
    %25 = vector.broadcast %cst_15 : f32 to vector<16x2xf32>
    %26 = arith.subf %25, %22 : vector<16x2xf32>
    %27 = arith.select %24, %22, %26 : vector<16x2xi1>, vector<16x2xf32>
    %c0_16 = arith.constant 0 : index
    %c0_17 = arith.constant 0 : index
    %28 = vector.load %arg6[%c0_16, %c0_17] : memref<16x2xf32, #tpu.memory_space<vmem>>, vector<16x2xf32>
    tpu.vector_store %arg6[%c0_16, %c0_17], %27 {strides = array<i32>} : memref<16x2xf32, #tpu.memory_space<vmem>>, vector<16x2xf32>,
    return
  }
  func.func @transform_0(%arg0: i32) -> (i32, i32) {
    %c0_i32 = arith.constant 0 : i32
    %c0_i32_0 = arith.constant 0 : i32
    return %arg0, %c0_i32 : i32, i32
  }
  func.func @transform_1(%arg0: i32) -> (i32, i32) {
    %c0_i32 = arith.constant 0 : i32
    %c0_i32_0 = arith.constant 0 : i32
    %c0_i32_1 = arith.constant 0 : i32
    return %c0_i32, %c0_i32_0 : i32, i32
  }
  func.func @transform_2(%arg0: i32) -> (i32, i32) {
    %c0_i32 = arith.constant 0 : i32
    %c0_i32_0 = arith.constant 0 : i32
    %c0_i32_1 = arith.constant 0 : i32
    return %c0_i32, %c0_i32_0 : i32, i32
  }
  func.func @transform_3(%arg0: i32) -> (i32, i32) {
    %c0_i32 = arith.constant 0 : i32
    %c0_i32_0 = arith.constant 0 : i32
    %c0_i32_1 = arith.constant 0 : i32
    return %c0_i32, %c0_i32_0 : i32, i32
  }
  func.func @transform_4(%arg0: i32) -> (i32, i32) {
    %c0_i32 = arith.constant 0 : i32
    %c0_i32_0 = arith.constant 0 : i32
    %c0_i32_1 = arith.constant 0 : i32
    return %c0_i32, %c0_i32_0 : i32, i32
  }
  func.func @transform_5(%arg0: i32) -> (i32, i32) {
    %c0_i32 = arith.constant 0 : i32
    %c0_i32_0 = arith.constant 0 : i32
    return %arg0, %c0_i32 : i32, i32
  }
}

</mosaic_0001>

<llo_original>
// kernel: neural_network_forward.1
$region0: #{neural_network_forward.1}
  #allocation0 [shape = 'u32[]', space=smem, size = 0x4, offset = 0x4, fixed_abs, tag = 'smem constant byte address 0x4 - core index']
  #allocation1 [shape = 'u32[144,128]{1,0:T(1,128)}', space=vmem, size = 0x12000, scoped, tag = 'internal scratch']
  %s0 = inlined_call_operand.vmem [shape: f32[16,128], index: 0, kind: input, shape index: {}]
  %s1 = inlined_call_operand.vmem [shape: bf16[128,128], index: 1, kind: input, shape index: {}]
  %s2 = inlined_call_operand.vmem [shape: f32[1,128], index: 2, kind: input, shape index: {}]
  %s3 = inlined_call_operand.vmem [shape: bf16[128,2], index: 3, kind: input, shape index: {}]
  %s4 = inlined_call_operand.vmem [shape: f32[1,2], index: 4, kind: input, shape index: {}]
  %s5 = inlined_call_operand.vmem [shape: f32[16,2], index: 5, kind: output, shape index: {}]
  %s6 = sld [smem:[#allocation0]]
  $region30: #{neural_network_forward.1} parent=0
    _
  %s8 = ssub.s32 1, %s6
  %s9 = scalar_select 0, %s8, %s6
  // Predicated region
  $region2: #{neural_network_forward.1} parent=0 // pred_check
    _
  $region3: #{neural_network_forward.1} parent=0 // pred_check_branch
    %11 = sbr.rel (0) target = $region5
  $region4: #{neural_network_forward.1} parent=0 // pred_region
    _
  $region5: #{neural_network_forward.1} parent=0 // pred_fallthru
    _
  // Predicated region
  $region6: #{neural_network_forward.1} parent=0 // pred_check
    _
  $region7: #{neural_network_forward.1} parent=0 // pred_check_branch
    %13 = sbr.rel (0) target = $region9
  $region8: #{neural_network_forward.1} parent=0 // pred_region
    _
  $region9: #{neural_network_forward.1} parent=0 // pred_fallthru
    _
  // Predicated region
  $region10: #{neural_network_forward.1} parent=0 // pred_check
    _
  $region11: #{neural_network_forward.1} parent=0 // pred_check_branch
    %15 = sbr.rel (0) target = $region13
  $region12: #{neural_network_forward.1} parent=0 // pred_region
    _
  $region13: #{neural_network_forward.1} parent=0 // pred_fallthru
    _
  // Predicated region
  $region14: #{neural_network_forward.1} parent=0 // pred_check
    _
  $region15: #{neural_network_forward.1} parent=0 // pred_check_branch
    %17 = sbr.rel (0) target = $region17
  $region16: #{neural_network_forward.1} parent=0 // pred_region
    _
  $region17: #{neural_network_forward.1} parent=0 // pred_fallthru
    _
  // Predicated region
  $region18: #{neural_network_forward.1} parent=0 // pred_check
    _
  $region19: #{neural_network_forward.1} parent=0 // pred_check_branch
    %19 = sbr.rel (0) target = $region21
  $region20: #{neural_network_forward.1} parent=0 // pred_region
    _
  $region21: #{neural_network_forward.1} parent=0 // pred_fallthru
    _
  %v21 = vld [vmem:[%s0] sm:$0xff]
  %v22 = vld [vmem:[%s0 + $0x8] sm:$0xff]
  %v23 = vpack.c.bf16 %v22, %v21
  %v24 = vld [vmem:[%s1] sm:$0xf]
  %v25 = vld [vmem:[%s1 + $0x4] sm:$0xf]
  %v26 = vld [vmem:[%s1 + $0x8] sm:$0xf]
  %v27 = vld [vmem:[%s1 + $0xc] sm:$0xf]
  %v28 = vld [vmem:[%s1 + $0x10] sm:$0xf]
  %v29 = vld [vmem:[%s1 + $0x14] sm:$0xf]
  %v30 = vld [vmem:[%s1 + $0x18] sm:$0xf]
  %v31 = vld [vmem:[%s1 + $0x1c] sm:$0xf]
  %v32 = vld [vmem:[%s1 + $0x20] sm:$0xf]
  %v33 = vld [vmem:[%s1 + $0x24] sm:$0xf]
  %v34 = vld [vmem:[%s1 + $0x28] sm:$0xf]
  %v35 = vld [vmem:[%s1 + $0x2c] sm:$0xf]
  %v36 = vld [vmem:[%s1 + $0x30] sm:$0xf]
  %v37 = vld [vmem:[%s1 + $0x34] sm:$0xf]
  %v38 = vld [vmem:[%s1 + $0x38] sm:$0xf]
  %v39 = vld [vmem:[%s1 + $0x3c] sm:$0xf]
  %v40 = vld [vmem:[%s2] sm:$0x1]
  %v42 = vlaneseq
  %v43 = vshrl.u32 %v42, 7
  %v44 = vsub.s32 0, %v43
  %v45 = vrot.slane %v40, %v44
  %v63 = vunpack.c.l.b16 %v24
  %v64 = vunpack.c.l.b16 %v25
  %v65 = vunpack.c.l.b16 %v26
  %v66 = vunpack.c.l.b16 %v27
  %v67 = vunpack.c.l.b16 %v28
  %v68 = vunpack.c.l.b16 %v29
  %v69 = vunpack.c.l.b16 %v30
  %v70 = vunpack.c.l.b16 %v31
  %v71 = vunpack.c.l.b16 %v32
  %v72 = vunpack.c.l.b16 %v33
  %v73 = vunpack.c.l.b16 %v34
  %v74 = vunpack.c.l.b16 %v35
  %v75 = vunpack.c.l.b16 %v36
  %v76 = vunpack.c.l.b16 %v37
  %v77 = vunpack.c.l.b16 %v38
  %v78 = vunpack.c.l.b16 %v39
  %v79 = vpack.c.b16 %v64, %v63
  %v80 = vpack.c.b16 %v66, %v65
  %v81 = vpack.c.b16 %v68, %v67
  %v82 = vpack.c.b16 %v70, %v69
  %v83 = vpack.c.b16 %v72, %v71
  %v84 = vpack.c.b16 %v74, %v73
  %v85 = vpack.c.b16 %v76, %v75
  %v86 = vpack.c.b16 %v78, %v77
  %95 = vmatprep.subr.bf16.mxu0 0
  %96 = vmatpush1.bf16.msra.mxu0 %v79
  %97 = vmatprep.subr.bf16.mxu0 0
  %98 = vmatpush1.bf16.msra.mxu0 %v80
  %99 = vmatprep.subr.bf16.mxu0 0
  %100 = vmatpush1.bf16.msra.mxu0 %v81
  %101 = vmatprep.subr.bf16.mxu0 0
  %102 = vmatpush1.bf16.msra.mxu0 %v82
  %103 = vmatprep.subr.bf16.mxu0 0
  %104 = vmatpush1.bf16.msra.mxu0 %v83
  %105 = vmatprep.subr.bf16.mxu0 0
  %106 = vmatpush1.bf16.msra.mxu0 %v84
  %107 = vmatprep.subr.bf16.mxu0 0
  %108 = vmatpush1.bf16.msra.mxu0 %v85
  %109 = vmatprep.subr.bf16.mxu0 0
  %110 = vmatpush1.bf16.msra.mxu0 %v86
  %111 = vmatprep.subr.bf16.mxu0 0
  %112 = vmatpush1.bf16.msra.mxu0 0
  %113 = vmatprep.subr.bf16.mxu0 0
  %114 = vmatpush1.bf16.msra.mxu0 0
  %115 = vmatprep.subr.bf16.mxu0 0
  %116 = vmatpush1.bf16.msra.mxu0 0
  %117 = vmatprep.subr.bf16.mxu0 0
  %118 = vmatpush1.bf16.msra.mxu0 0
  %119 = vmatprep.subr.bf16.mxu0 0
  %120 = vmatpush1.bf16.msra.mxu0 0
  %121 = vmatprep.subr.bf16.mxu0 0
  %122 = vmatpush1.bf16.msra.mxu0 0
  %123 = vmatprep.subr.bf16.mxu0 0
  %124 = vmatpush1.bf16.msra.mxu0 0
  %125 = vmatprep.subr.bf16.mxu0 0
  %126 = vmatpush1.bf16.msra.mxu0 0
  %127 = vmatprep.mubr.bf16.mxu0 0
  %128 = vmatmul.mubr.bf16.gmra.mrb[0].mxu0 %v23
  %v129 = vpop.f32.mrb[0].mxu0
  %v130 = vadd.f32 %v45, %v129
  %v131 = vpop.f32.mrb[0].mxu0
  %v132 = vpop.f32.mrb[0].mxu0
  %v133 = vadd.f32 %v45, %v132
  %v134 = vpop.f32.mrb[0].mxu0
  %135 = vdwg.mxu0
  %v136 = vmax.f32 %v130, 0.0
  %v137 = vmax.f32 %v133, 0.0
  %v138 = vpack.c.bf16 %v137, %v136
  %v139 = vld [vmem:[%s3] sm:$0xf]
  %v140 = vld [vmem:[%s3 + $0x4] sm:$0xf]
  %v141 = vld [vmem:[%s3 + $0x8] sm:$0xf]
  %v142 = vld [vmem:[%s3 + $0xc] sm:$0xf]
  %v143 = vld [vmem:[%s3 + $0x10] sm:$0xf]
  %v144 = vld [vmem:[%s3 + $0x14] sm:$0xf]
  %v145 = vld [vmem:[%s3 + $0x18] sm:$0xf]
  %v146 = vld [vmem:[%s3 + $0x1c] sm:$0xf]
  %v147 = vld [vmem:[%s3 + $0x20] sm:$0xf]
  %v148 = vld [vmem:[%s3 + $0x24] sm:$0xf]
  %v149 = vld [vmem:[%s3 + $0x28] sm:$0xf]
  %v150 = vld [vmem:[%s3 + $0x2c] sm:$0xf]
  %v151 = vld [vmem:[%s3 + $0x30] sm:$0xf]
  %v152 = vld [vmem:[%s3 + $0x34] sm:$0xf]
  %v153 = vld [vmem:[%s3 + $0x38] sm:$0xf]
  %v154 = vld [vmem:[%s3 + $0x3c] sm:$0xf]
  %v155 = vld [vmem:[%s4] sm:$0x1]
  %v157 = vlaneseq
  %v158 = vshrl.u32 %v157, 7
  %v159 = vsub.s32 0, %v158
  %v160 = vrot.slane %v155, %v159
  %v178 = vunpack.c.l.b16 %v139
  %v179 = vunpack.c.l.b16 %v140
  %v180 = vunpack.c.l.b16 %v141
  %v181 = vunpack.c.l.b16 %v142
  %v182 = vunpack.c.l.b16 %v143
  %v183 = vunpack.c.l.b16 %v144
  %v184 = vunpack.c.l.b16 %v145
  %v185 = vunpack.c.l.b16 %v146
  %v186 = vunpack.c.l.b16 %v147
  %v187 = vunpack.c.l.b16 %v148
  %v188 = vunpack.c.l.b16 %v149
  %v189 = vunpack.c.l.b16 %v150
  %v190 = vunpack.c.l.b16 %v151
  %v191 = vunpack.c.l.b16 %v152
  %v192 = vunpack.c.l.b16 %v153
  %v193 = vunpack.c.l.b16 %v154
  %v194 = vpack.c.b16 %v179, %v178
  %v195 = vpack.c.b16 %v181, %v180
  %v196 = vpack.c.b16 %v183, %v182
  %v197 = vpack.c.b16 %v185, %v184
  %v198 = vpack.c.b16 %v187, %v186
  %v199 = vpack.c.b16 %v189, %v188
  %v200 = vpack.c.b16 %v191, %v190
  %v201 = vpack.c.b16 %v193, %v192
  %210 = vmatprep.subr.bf16.mxu0 0
  %211 = vmatpush1.bf16.msra.mxu0 %v194
  %212 = vmatprep.subr.bf16.mxu0 0
  %213 = vmatpush1.bf16.msra.mxu0 %v195
  %214 = vmatprep.subr.bf16.mxu0 0
  %215 = vmatpush1.bf16.msra.mxu0 %v196
  %216 = vmatprep.subr.bf16.mxu0 0
  %217 = vmatpush1.bf16.msra.mxu0 %v197
  %218 = vmatprep.subr.bf16.mxu0 0
  %219 = vmatpush1.bf16.msra.mxu0 %v198
  %220 = vmatprep.subr.bf16.mxu0 0
  %221 = vmatpush1.bf16.msra.mxu0 %v199
  %222 = vmatprep.subr.bf16.mxu0 0
  %223 = vmatpush1.bf16.msra.mxu0 %v200
  %224 = vmatprep.subr.bf16.mxu0 0
  %225 = vmatpush1.bf16.msra.mxu0 %v201
  %226 = vmatprep.subr.bf16.mxu0 0
  %227 = vmatpush1.bf16.msra.mxu0 0
  %228 = vmatprep.subr.bf16.mxu0 0
  %229 = vmatpush1.bf16.msra.mxu0 0
  %230 = vmatprep.subr.bf16.mxu0 0
  %231 = vmatpush1.bf16.msra.mxu0 0
  %232 = vmatprep.subr.bf16.mxu0 0
  %233 = vmatpush1.bf16.msra.mxu0 0
  %234 = vmatprep.subr.bf16.mxu0 0
  %235 = vmatpush1.bf16.msra.mxu0 0
  %236 = vmatprep.subr.bf16.mxu0 0
  %237 = vmatpush1.bf16.msra.mxu0 0
  %238 = vmatprep.subr.bf16.mxu0 0
  %239 = vmatpush1.bf16.msra.mxu0 0
  %240 = vmatprep.subr.bf16.mxu0 0
  %241 = vmatpush1.bf16.msra.mxu0 0
  %242 = vmatprep.mubr.bf16.mxu0 0
  %243 = vmatmul.mubr.bf16.gmra.mrb[0].mxu0 %v138
  %v244 = vpop.f32.mrb[0].mxu0
  %v245 = vadd.f32 %v160, %v244
  %v246 = vpop.f32.mrb[0].mxu0
  %v247 = vpop.f32.mrb[0].mxu0
  %v248 = vadd.f32 %v160, %v247
  %v249 = vpop.f32.mrb[0].mxu0
  %250 = vdwg.mxu0
  %v251 = vand.u32 2147483647, %v245
  %v252 = vand.u32 2147483647, %v248
  %v253 = vsub.f32 0.0, %v251
  %v254 = vsub.f32 0.0, %v252
  %v255 = vmul.f32 %v253, 1.442695
  %v256 = vpow.pop %v255
  %v257 = vmul.f32 %v254, 1.442695
  %v258 = vpow.pop %v257
  %v259 = vadd.f32 %v256, 1.0
  %v260 = vadd.f32 %v258, 1.0
  %v261 = vrcp.pop %v259
  %v262 = vmul.f32 1.0, %v261
  %v263 = vrcp.pop %v260
  %v264 = vmul.f32 1.0, %v263
  %vm265 = vcmp.ge.f32.partialorder %v245, 0.0
  %vm266 = vcmp.ge.f32.partialorder %v248, 0.0
  %v267 = vsub.f32 1.0, %v262
  %v268 = vsub.f32 1.0, %v264
  %v269 = vsel %vm265, %v262, %v267
  %v270 = vsel %vm266, %v264, %v268
  %vm271 = vcmask 15360
  %272 = vst.msk [vmem:[%s5] sm:$0xff] %vm271, %v269
  %273 = vst.msk [vmem:[%s5 + $0x8] sm:$0xff] %vm271, %v270
  // Predicated region
  $region22: #{neural_network_forward.1} parent=0 // pred_check
    _
  $region23: #{neural_network_forward.1} parent=0 // pred_check_branch
    %275 = sbr.rel (0) target = $region25
  $region24: #{neural_network_forward.1} parent=0 // pred_region
    _
  $region25: #{neural_network_forward.1} parent=0 // pred_fallthru
    _
  // Predicated region
  $region26: #{neural_network_forward.1} parent=0 // pred_check
    _
  $region27: #{neural_network_forward.1} parent=0 // pred_check_branch
    %277 = sbr.rel (0) target = $region29
  $region28: #{neural_network_forward.1} parent=0 // pred_region
    _
  $region29: #{neural_network_forward.1} parent=0 // pred_fallthru
    _

</llo_original>
